<compile_context>
chip_gen: v7x
topology: tpu7x:2x2x1
jax: 0.10.0
libtpu: 0.0.40
codegen_flags: <defaults>
</compile_context>

<pallas_src>
import functools

import jax
import jax.numpy as jnp
import numpy as np
from jax.experimental import pallas as pl
from jax.experimental.pallas import tpu as pltpu


def _int_power(x, e):
    """x ** e for a static non-negative Python int e (exponentiation by squaring)."""
    if e == 0:
        return jnp.ones_like(x)
    result = None
    base = x
    while e > 0:
        if e & 1:
            result = base if result is None else result * base
        e >>= 1
        if e:
            base = base * base
    return result


def _polynomial_kernel(ab_ref, xi_ref, xjt_ref, o_ref, acc_ref, *, exponent):
    # ab_ref : SMEM (2,)        -> [a = posnum[0] (scale), b = posnum[1] (bias)]
    # xi_ref : (1, tn, tk)      row panel (VMEM-resident across the whole j/k sweep for fixed i)
    # xjt_ref: (1, tk, tn)      pre-transposed column panel (lane-dense)
    # o_ref  : (1, tn, tn)      output tile of the kernel matrix
    # acc_ref: (tn, tn) f32     VMEM accumulator across the K (contraction) grid axis
    k = pl.program_id(3)

    @pl.when(k == 0)
    def _():
        acc_ref[...] = jnp.zeros_like(acc_ref)

    # Native-dtype operands on the MXU, f32 accumulation.
    acc_ref[...] += jnp.dot(xi_ref[0], xjt_ref[0],
                            preferred_element_type=jnp.float32)

    @pl.when(k == pl.num_programs(3) - 1)
    def _():
        a = ab_ref[0]
        b = ab_ref[1]
        base = acc_ref[...] * a + b              # scale/bias post-matmul, on f32 acc
        # Static integer exponent -> a handful of VPU multiplies, no transcendentals.
        o_ref[0] = _int_power(base, exponent).astype(o_ref.dtype)


def _round_up(x, m):
    return -(-x // m) * m


def _choose_tiling(N, D, in_itemsize, out_itemsize, budget):
    """Pick (n_pad, tn, d_pad, tk, footprint) so double-buffered tiles fit `budget` bytes."""

    def footprint(tn, tk):
        return (2 * tn * tn * out_itemsize            # output tile, double-buffered
                + 2 * tn * tk * in_itemsize           # row panel, double-buffered
                + 2 * tk * tn * in_itemsize           # column panel, double-buffered
                + tn * tn * 4)                        # f32 accumulator scratch

    # ---- N / tn: lane-dense multiples of 128 whenever possible. ----
    if N <= 512 and N % 128 != 0:
        n_pad, tn_cands = N, [N]                      # single full-extent tile, no padding
    else:
        n_pad = _round_up(N, 128)
        cap = min(n_pad, 1024)
        tn_cands = [t for t in range(cap, 0, -128) if n_pad % t == 0]

    tn = tn_cands[-1]
    for t in tn_cands:                                # largest tn viable with tk <= 512
        if footprint(t, min(D, 512)) <= budget:
            tn = t
            break

    # ---- D / tk: keep the whole contraction resident when it fits, else K-tile. ----
    if footprint(tn, D) <= budget:
        d_pad, tk = D, D
    else:
        d_pad = _round_up(D, 128)
        tk = 128
        for cand in (512, 384, 256, 128):
            if d_pad % cand == 0 and footprint(tn, cand) <= budget:
                tk = cand
                break
    return n_pad, tn, d_pad, tk, footprint(tn, tk)


def polynomial_kernel_layer(vct, posnum, posint):
    """Pallas forward of polynomial_kernel_layer (has_pattern=False).

    vct:    (B, N, D) or (N, D) float array
    posnum: (2,) -> [scale, bias]
    posint: scalar; exponent e = ceil(|posint|) is specialized statically
    returns (B, N, N) kernel matrix (or (N, N) if B == 1, matching torch .squeeze(0)).
    """
    if vct.ndim == 2:
        vct = vct[None]
    B, N, D = vct.shape

    # NOTE: posint must be concrete at trace time (it is a static module parameter);
    # a traced value under jit would raise a ConcretizationTypeError here.
    exponent = int(np.ceil(abs(float(posint))))
    ab = jnp.asarray(posnum, jnp.float32).reshape(2)

    in_isz = jnp.dtype(vct.dtype).itemsize
    out_isz = in_isz

    try:
        vmem_cap = int(pltpu.get_tpu_info().vmem_capacity_bytes)
    except Exception:                                   # pragma: no cover
        vmem_cap = 64 << 20                             # conservative (v7x per-core VMEM)
    budget = int(vmem_cap * 0.4)

    n_pad, tn, d_pad, tk, fp = _choose_tiling(N, D, in_isz, out_isz, budget)

    vct_p = vct
    if n_pad != N or d_pad != D:
        # Zero padding leaves inner products unchanged; padded rows/cols are sliced off.
        vct_p = jnp.pad(vct, ((0, 0), (0, n_pad - N), (0, d_pad - D)))
    vct_t = jnp.swapaxes(vct_p, 1, 2)                   # (B, D_pad, N_pad) column panel

    nt = n_pad // tn
    nk = d_pad // tk
    grid = (B, nt, nt, nk)                              # j, then k innermost

    # Explicit scoped-VMEM limit: above the actual footprint (with headroom),
    # below the physical capacity of the current generation.
    vmem_limit = int(min(max(vmem_cap - (4 << 20), 16 << 20),
                         max(2 * fp + (8 << 20), 16 << 20)))

    out = pl.pallas_call(
        functools.partial(_polynomial_kernel, exponent=exponent),
        out_shape=jax.ShapeDtypeStruct((B, n_pad, n_pad), vct.dtype),
        grid=grid,
        in_specs=[
            pl.BlockSpec(memory_space=pltpu.MemorySpace.SMEM),           # [a, b]
            pl.BlockSpec((1, tn, tk), lambda b, i, j, k: (b, i, k)),     # row panel (j-invariant)
            pl.BlockSpec((1, tk, tn), lambda b, i, j, k: (b, k, j)),     # pre-transposed column panel
        ],
        out_specs=pl.BlockSpec((1, tn, tn), lambda b, i, j, k: (b, i, j)),
        scratch_shapes=[pltpu.VMEM((tn, tn), jnp.float32)],
        compiler_params=pltpu.CompilerParams(
            dimension_semantics=("parallel", "parallel", "arbitrary", "arbitrary"),
            vmem_limit_bytes=vmem_limit),
    )(ab, vct_p, vct_t)

    if n_pad != N:
        out = out[:, :N, :N]
    if B == 1:
        out = out[0]                                    # torch: inner.squeeze(0)
    return out


def _reference(vct, posnum, posint):
    # Direct transcription of the PyTorch forward in plain JAX.
    vct_h = jnp.swapaxes(vct, -1, -2)[..., None, :, :]
    vct_h = jnp.squeeze(vct_h, axis=-3)
    inner = jnp.matmul(vct, vct_h)
    if inner.ndim > 2 and inner.shape[0] == 1:
        inner = inner[0]
    e = jnp.ceil(jnp.abs(jnp.asarray(posint, jnp.float32)))
    return (inner * posnum[0] + posnum[1]) ** e


if __name__ == "__main__":
    key = jax.random.PRNGKey(0)
    k1, k2 = jax.random.split(key)

    # Module parameters (learnable in torch; fixed deterministic values here).
    posnum = jnp.array([1.25, 0.5], dtype=jnp.float32)
    posint = jnp.float32(2.3)                     # ceil(|2.3|) = 3

    # Small case: single full-extent tile per batch entry.
    B, N, D = 2, 8, 32
    vct = jax.random.normal(k1, (B, N, D), dtype=jnp.float32)
    out = jax.block_until_ready(polynomial_kernel_layer(vct, posnum, posint))
    ref = _reference(vct, posnum, posint)
    assert out.shape == (B, N, N)
    assert jnp.allclose(out, ref, atol=1e-3, rtol=1e-4), \
        f"max abs err {jnp.max(jnp.abs(out - ref))}"

    # Tiled case: lane-dense 384-wide tiles, pre-transposed column panel, (b,i,j,k) grid.
    B2, N2, D2 = 2, 384, 32
    vct2 = jax.random.normal(k2, (B2, N2, D2), dtype=jnp.float32)
    out2 = jax.block_until_ready(polynomial_kernel_layer(vct2, posnum, posint))
    ref2 = _reference(vct2, posnum, posint)
    assert out2.shape == (B2, N2, N2)
    assert jnp.allclose(out2, ref2, atol=1e-3, rtol=1e-4), \
        f"max abs err {jnp.max(jnp.abs(out2 - ref2))}"

    print("KERNEL_OK")
</pallas_src>

<mosaic_0001>
module attributes {stable_mosaic.version = 11 : i64} {
  func.func @_polynomial_kernel(%arg0: i32, %arg1: i32, %arg2: i32, %arg3: i32, %arg4: memref<2xf32, #tpu.memory_space<smem>>, %arg5: memref<1x8x32xf32, #tpu.memory_space<vmem>>, %arg6: memref<1x32x8xf32, #tpu.memory_space<vmem>>, %arg7: memref<1x8x8xf32, #tpu.memory_space<vmem>>, %arg8: memref<8x8xf32, #tpu.memory_space<vmem>>) attributes {dimension_semantics = [#tpu.dimension_semantics<parallel>, #tpu.dimension_semantics<parallel>, #tpu.dimension_semantics<arbitrary>, #tpu.dimension_semantics<arbitrary>], iteration_bounds = array<i64: 2, 1, 1, 1>, scalar_prefetch = 0 : i64, scratch_operands = 1 : i64, tpu.core_type = #tpu.core_type<tc>, window_params = [{transform_indices = @transform_0, window_bounds = array<i64: 2>}, {transform_indices = @transform_1, window_bounds = array<i64: 1, 8, 32>}, {transform_indices = @transform_2, window_bounds = array<i64: 1, 32, 8>}, {transform_indices = @transform_3, window_bounds = array<i64: 1, 8, 8>}]} {
    %c0_i32 = arith.constant 0 : i32
    %0 = arith.cmpi eq, %arg3, %c0_i32 : i32
    %1 = arith.extui %0 : i1 to i32
    %c0_i32_0 = arith.constant 0 : i32
    %2 = arith.cmpi ne, %1, %c0_i32_0 : i32
    scf.if %2 {
      %cst_12 = arith.constant 0.000000e+00 : f32
      %14 = vector.broadcast %cst_12 : f32 to vector<8x8xf32>
      %c0_13 = arith.constant 0 : index
      %c0_14 = arith.constant 0 : index
      %15 = vector.load %arg8[%c0_13, %c0_14] : memref<8x8xf32, #tpu.memory_space<vmem>>, vector<8x8xf32>
      tpu.vector_store %arg8[%c0_13, %c0_14], %14 {strides = array<i32>} : memref<8x8xf32, #tpu.memory_space<vmem>>, vector<8x8xf32>,
    } else {
    }
    %c0 = arith.constant 0 : index
    %c0_1 = arith.constant 0 : index
    %3 = vector.load %arg8[%c0, %c0_1] : memref<8x8xf32, #tpu.memory_space<vmem>>, vector<8x8xf32>
    %c0_2 = arith.constant 0 : index
    %c0_3 = arith.constant 0 : index
    %c0_4 = arith.constant 0 : index
    %4 = vector.load %arg5[%c0_2, %c0_3, %c0_4] : memref<1x8x32xf32, #tpu.memory_space<vmem>>, vector<1x8x32xf32>
    %5 = vector.shape_cast %4 : vector<1x8x32xf32> to vector<8x32xf32>
    %c0_5 = arith.constant 0 : index
    %c0_6 = arith.constant 0 : index
    %c0_7 = arith.constant 0 : index
    %6 = vector.load %arg6[%c0_5, %c0_6, %c0_7] : memref<1x32x8xf32, #tpu.memory_space<vmem>>, vector<1x32x8xf32>
    %7 = vector.shape_cast %6 : vector<1x32x8xf32> to vector<32x8xf32>
    %cst = arith.constant dense<0.000000e+00> : vector<8x8xf32>
    %8 = tpu.matmul %5, %7, %cst {dimension_numbers = #tpu.dot_dimension_numbers<[1], [0], [0], [1], [0, 0, 1, 1], [], []>} : vector<8x32xf32>, vector<32x8xf32>, vector<8x8xf32> -> vector<8x8xf32>
    %9 = arith.addf %3, %8 : vector<8x8xf32>
    %c0_8 = arith.constant 0 : index
    %c0_9 = arith.constant 0 : index
    %10 = vector.load %arg8[%c0_8, %c0_9] : memref<8x8xf32, #tpu.memory_space<vmem>>, vector<8x8xf32>
    tpu.vector_store %arg8[%c0_8, %c0_9], %9 {strides = array<i32>} : memref<8x8xf32, #tpu.memory_space<vmem>>, vector<8x8xf32>,
    %c0_i32_10 = arith.constant 0 : i32
    %11 = arith.cmpi eq, %arg3, %c0_i32_10 : i32
    %12 = arith.extui %11 : i1 to i32
    %c0_i32_11 = arith.constant 0 : i32
    %13 = arith.cmpi ne, %12, %c0_i32_11 : i32
    scf.if %13 {
      %c0_12 = arith.constant 0 : index
      %14 = memref.load %arg4[%c0_12] : memref<2xf32, #tpu.memory_space<smem>>
      %c1 = arith.constant 1 : index
      %15 = memref.load %arg4[%c1] : memref<2xf32, #tpu.memory_space<smem>>
      %c0_13 = arith.constant 0 : index
      %c0_14 = arith.constant 0 : index
      %16 = vector.load %arg8[%c0_13, %c0_14] : memref<8x8xf32, #tpu.memory_space<vmem>>, vector<8x8xf32>
      %17 = vector.broadcast %14 : f32 to vector<8x8xf32>
      %18 = arith.mulf %16, %17 : vector<8x8xf32>
      %19 = vector.broadcast %15 : f32 to vector<8x8xf32>
      %20 = arith.addf %18, %19 : vector<8x8xf32>
      %21 = arith.mulf %20, %20 : vector<8x8xf32>
      %22 = arith.mulf %20, %21 : vector<8x8xf32>
      %c0_15 = arith.constant 0 : index
      %c0_16 = arith.constant 0 : index
      %c0_17 = arith.constant 0 : index
      %23 = vector.load %arg7[%c0_15, %c0_16, %c0_17] : memref<1x8x8xf32, #tpu.memory_space<vmem>>, vector<1x8x8xf32>
      %24 = vector.shape_cast %23 : vector<1x8x8xf32> to vector<8x8xf32>
      %25 = vector.shape_cast %22 : vector<8x8xf32> to vector<1x8x8xf32>
      tpu.vector_store %arg7[%c0_15, %c0_16, %c0_17], %25 {strides = array<i32>} : memref<1x8x8xf32, #tpu.memory_space<vmem>>, vector<1x8x8xf32>,
    } else {
    }
    return
  }
  func.func @transform_0(%arg0: i32, %arg1: i32, %arg2: i32, %arg3: i32) -> i32 {
    %c0_i32 = arith.constant 0 : i32
    %c0_i32_0 = arith.constant 0 : i32
    return %c0_i32 : i32
  }
  func.func @transform_1(%arg0: i32, %arg1: i32, %arg2: i32, %arg3: i32) -> (i32, i32, i32) {
    %c0_i32 = arith.constant 0 : i32
    return %arg0, %arg1, %arg3 : i32, i32, i32
  }
  func.func @transform_2(%arg0: i32, %arg1: i32, %arg2: i32, %arg3: i32) -> (i32, i32, i32) {
    %c0_i32 = arith.constant 0 : i32
    return %arg0, %arg3, %arg2 : i32, i32, i32
  }
  func.func @transform_3(%arg0: i32, %arg1: i32, %arg2: i32, %arg3: i32) -> (i32, i32, i32) {
    %c0_i32 = arith.constant 0 : i32
    return %arg0, %arg1, %arg2 : i32, i32, i32
  }
}

</mosaic_0001>

<llo_original>
// kernel: tpu_custom_call.1
$region0: #{tpu_custom_call.1}
  #allocation0 [shape = 'u32[]', space=smem, size = 0x4, offset = 0x4, fixed_abs, tag = 'smem constant byte address 0x4 - core index']
  #allocation1 [shape = 'u32[144,128]{1,0:T(1,128)}', space=vmem, size = 0x12000, scoped, tag = 'internal scratch']
  #allocation2 [shape = 'f32[8,8]{1,0:T(8,128)}', space=vmem, size = 0x1000, scoped, tag = 'scratch operand']
  %s0 = inlined_call_operand.vmem [shape: f32[2], index: 0, kind: input, shape index: {}]
  %s1 = inlined_call_operand.vmem [shape: f32[2,8,32], index: 1, kind: input, shape index: {}]
  %s2 = inlined_call_operand.vmem [shape: f32[2,32,8], index: 2, kind: input, shape index: {}]
  %s3 = inlined_call_operand.hbm [shape: f32[2,8,8], index: 3, kind: output, shape index: {}]
  %s4 = sld [smem:[#allocation0]]
  $region57: #{tpu_custom_call.1} parent=0
    _
  %s6 = ssub.s32 1, %s4
  %s7 = scalar_select 0, %s6, %s4
  $region1: #{tpu_custom_call.1} parent=0
    #allocation3 [shape = 'u8[512]{0}', space=smem, size = 0x200, scoped, tag = 'input window, operand 0, single buffered']
    #allocation4 [shape = 's32[2]{0}', space=sflag, size = 0x8, scoped, tag = 'scoped memory for tpu_custom_call.1']
    #allocation5 [shape = 's32[2]{0}', space=sflag, size = 0x8, scoped, tag = 'scoped memory for tpu_custom_call.1']
    #allocation6 [shape = 'u8[8192]{0}', space=vmem, size = 0x2000, scoped, tag = 'output window, operand 0']
    %8 = vsyncpa [#allocation5], 0
    %9 = vsyncpa [#allocation4], 0
    %s10 = scalar_lea.sflag [#allocation4], 1
    %11 = vsyncpa %s10, 0
    loop: start=0, step=1, limit=4
    $region2: #{tpu_custom_call.1} parent=1 // loop_pre_header
      _
    $region3: #{tpu_custom_call.1} parent=1 // loop_header
      %s13 = sphi 0, %s17
      %p14 = scmp.ge.s32.totalorder %s13, 4
      %s20 = sphi 0, %s46
      %s21 = sphi 0, %s42
      %s22 = sphi 0, %s38
      %s23 = sphi 0, %s34
      %s24 = sphi 0, %s20
      %s25 = sphi 0, %s21
      %s26 = sphi 0, %s22
      %s27 = sphi 0, %s23
      %s28 = sphi 0, %s24
      %s29 = sphi 0, %s25
      %s30 = sphi 0, %s26
      %s31 = sphi 0, %s27
      %s47 = sphi 0, %s47
      %s49 = sphi 0, %s47
      %s50 = sphi 0, %s49
      %s64 = sphi 0, %s50
      %s74 = sphi 0, %s76
      %s77 = sphi 0, %s74
      %s78 = sphi 0, %s77
      %s94 = sphi 0, %s78
      %s104 = sphi 0, %s106
      %s107 = sphi 0, %s104
      %s108 = sphi 0, %s107
      %s124 = sphi 0, %s108
      %s134 = sphi 0, %s136
      %s137 = sphi 0, %s134
      %s138 = sphi 0, %s137
      %s154 = sphi 0, %s138
    $region4: #{tpu_custom_call.1} parent=1 // loop_header_branch
      %16 = sbr.rel (%p14) target = $region8
    $region5: #{tpu_custom_call.1} parent=1 // loop_body
      %s18 = ssub.s32 %s13, 1
      %s19 = ssub.s32 %s13, 2
      %s32 = sadd.s32 1, %s23
      %p33 = scmp.ge.s32.totalorder %s32, 1
      %s34 = scalar_select %p33, 0, %s32
      %s35 = sadd.s32 1, %s22
      %s36 = scalar_select %p33, %s35, %s22
      %p37 = scmp.ge.s32.totalorder %s36, 1
      %s38 = scalar_select %p37, 0, %s36
      %s39 = sadd.s32 1, %s21
      %s40 = scalar_select %p37, %s39, %s21
      %p41 = scmp.ge.s32.totalorder %s40, 1
      %s42 = scalar_select %p41, 0, %s40
      %s43 = sadd.s32 1, %s20
      %s44 = scalar_select %p41, %s43, %s20
      %p45 = scmp.ge.s32.totalorder %s44, 2
      %s46 = scalar_select %p45, 0, %s44
      %s48 = sadd.s32 %s47, 1
      %p51 = scmp.eq.s32.totalorder %s13, 1
      %p52 = scmp.ne.s32.totalorder %s47, %s49
      %p53 = scmp.eq.s32.totalorder %s13, 0
      %p54 = por %p52, %p53
      %p55 = scmp.ne.s32.totalorder %s47, %s49
      %p56 = scmp.eq.s32.totalorder %s18, 1
      %p57 = por %p55, %p56
      %p58 = scmp.ne.s32.totalorder %s49, %s50
      %p59 = scmp.eq.s32.totalorder %s18, 0
      %p60 = por %p58, %p59
      %p61 = scmp.ne.s32.totalorder %s49, %s50
      %p62 = scmp.eq.s32.totalorder %s19, 1
      %p63 = por %p61, %p62
      %p65 = scmp.ne.s32.totalorder %s50, %s64
      %p66 = scmp.eq.s32.totalorder %s19, 0
      %p67 = por %p65, %p66
      %s68 = ssub.s32 %s20, %s46
      %s69 = ssub.s32 %s21, %s42
      %s70 = sor.u32 %s68, %s69
      %s71 = ssub.s32 %s23, %s34
      %s72 = sor.u32 %s70, %s71
      %p73 = scmp.eq.s32.totalorder %s72, 0
      %s75 = sadd.s32 %s74, 1
      %s76 = scalar_select %p73, %s74, %s75
      %p79 = pneg %p73
      %p80 = scmp.eq.s32.totalorder %s13, 1
      %p81 = por %p79, %p80
      %p82 = scmp.ne.s32.totalorder %s74, %s77
      %p83 = scmp.eq.s32.totalorder %s13, 0
      %p84 = por %p82, %p83
      %p85 = scmp.ne.s32.totalorder %s74, %s77
      %p86 = scmp.eq.s32.totalorder %s18, 1
      %p87 = por %p85, %p86
      %p88 = scmp.ne.s32.totalorder %s77, %s78
      %p89 = scmp.eq.s32.totalorder %s18, 0
      %p90 = por %p88, %p89
      %p91 = scmp.ne.s32.totalorder %s77, %s78
      %p92 = scmp.eq.s32.totalorder %s19, 1
      %p93 = por %p91, %p92
      %p95 = scmp.ne.s32.totalorder %s78, %s94
      %p96 = scmp.eq.s32.totalorder %s19, 0
      %p97 = por %p95, %p96
      %s98 = ssub.s32 %s20, %s46
      %s99 = ssub.s32 %s23, %s34
      %s100 = sor.u32 %s98, %s99
      %s101 = ssub.s32 %s22, %s38
      %s102 = sor.u32 %s100, %s101
      %p103 = scmp.eq.s32.totalorder %s102, 0
      %s105 = sadd.s32 %s104, 1
      %s106 = scalar_select %p103, %s104, %s105
      %p109 = pneg %p103
      %p110 = scmp.eq.s32.totalorder %s13, 1
      %p111 = por %p109, %p110
      %p112 = scmp.ne.s32.totalorder %s104, %s107
      %p113 = scmp.eq.s32.totalorder %s13, 0
      %p114 = por %p112, %p113
      %p115 = scmp.ne.s32.totalorder %s104, %s107
      %p116 = scmp.eq.s32.totalorder %s18, 1
      %p117 = por %p115, %p116
      %p118 = scmp.ne.s32.totalorder %s107, %s108
      %p119 = scmp.eq.s32.totalorder %s18, 0
      %p120 = por %p118, %p119
      %p121 = scmp.ne.s32.totalorder %s107, %s108
      %p122 = scmp.eq.s32.totalorder %s19, 1
      %p123 = por %p121, %p122
      %p125 = scmp.ne.s32.totalorder %s108, %s124
      %p126 = scmp.eq.s32.totalorder %s19, 0
      %p127 = por %p125, %p126
      %s128 = ssub.s32 %s20, %s46
      %s129 = ssub.s32 %s21, %s42
      %s130 = sor.u32 %s128, %s129
      %s131 = ssub.s32 %s22, %s38
      %s132 = sor.u32 %s130, %s131
      %p133 = scmp.eq.s32.totalorder %s132, 0
      %s135 = sadd.s32 %s134, 1
      %s136 = scalar_select %p133, %s134, %s135
      %p139 = pneg %p133
      %p140 = scmp.eq.s32.totalorder %s13, 1
      %p141 = por %p139, %p140
      %p142 = scmp.ne.s32.totalorder %s134, %s137
      %p143 = scmp.eq.s32.totalorder %s13, 0
      %p144 = por %p142, %p143
      %p145 = scmp.ne.s32.totalorder %s134, %s137
      %p146 = scmp.eq.s32.totalorder %s18, 1
      %p147 = por %p145, %p146
      %p148 = scmp.ne.s32.totalorder %s137, %s138
      %p149 = scmp.eq.s32.totalorder %s18, 0
      %p150 = por %p148, %p149
      %p151 = scmp.ne.s32.totalorder %s137, %s138
      %p152 = scmp.eq.s32.totalorder %s19, 1
      %p153 = por %p151, %p152
      %p155 = scmp.ne.s32.totalorder %s138, %s154
      %p156 = scmp.eq.s32.totalorder %s19, 0
      %p157 = por %p155, %p156
      %p158 = scmp.le.s32.totalorder 1, %s13
      %p159 = scmp.lt.s32.totalorder %s13, 3
      %p160 = pnand %p158, %p159
      %p161 = pneg %p160
      // Predicated region
      $region9: #{tpu_custom_call.1} parent=5 // pred_check
        _
      $region10: #{tpu_custom_call.1} parent=5 // pred_check_branch
        %163 = sbr.rel (%p160) target = $region12
      $region11: #{tpu_custom_call.1} parent=5 // pred_region
        %s164 = ssub.s32 %s13, 1
        // Predicated region
        $region13: #{tpu_custom_call.1} parent=11 // pred_check
          %p165 = pneg %p60
        $region14: #{tpu_custom_call.1} parent=11 // pred_check_branch
          %167 = sbr.rel (%p165) target = $region16
        $region15: #{tpu_custom_call.1} parent=11 // pred_region
          %s169 = ssub.s32 16, 16
          %170 = vsyncadd [#allocation5], %s169
          %s172 = sshll.u32 %s0, 4
          %s173 = int_to_ptr.vmem [resolvable:$true] %s172
          %175 = dma.vmem_to_smem %s173, 16, [#allocation3], [#allocation5]
        $region16: #{tpu_custom_call.1} parent=11 // pred_fallthru
          _
      $region12: #{tpu_custom_call.1} parent=5 // pred_fallthru
        _
      %p176 = scmp.lt.s32.totalorder %s13, 2
      // Predicated region
      $region17: #{tpu_custom_call.1} parent=5 // pred_check
        %p177 = pneg %p176
      $region18: #{tpu_custom_call.1} parent=5 // pred_check_branch
        %179 = sbr.rel (%p177) target = $region20
      $region19: #{tpu_custom_call.1} parent=5 // pred_region
        // Predicated region
        $region21: #{tpu_custom_call.1} parent=19 // pred_check
          %p180 = pneg %p84
        $region22: #{tpu_custom_call.1} parent=19 // pred_check_branch
          %182 = sbr.rel (%p180) target = $region24
        $region23: #{tpu_custom_call.1} parent=19 // pred_region
          %p183 = scmp.lt.s32.totalorder %s20, 1
          %s184 = scalar_select %p183, %s20, 1
          %p185 = scmp.lt.s32.totalorder %s21, 0
          %s186 = scalar_select %p185, %s21, 0
          %p187 = scmp.lt.s32.totalorder %s23, 0
          %s188 = scalar_select %p187, %s23, 0
          %s189 = sadd.s32 %s188, %s186
          %s190 = sadd.s32 %s189, %s184
          %s191 = smul.addr %s190, 8
          %s192 = scalar_lea.vmem %s1, %s191
        $region24: #{tpu_custom_call.1} parent=19 // pred_fallthru
          _
        // Predicated region
        $region25: #{tpu_custom_call.1} parent=19 // pred_check
          %p193 = pneg %p114
        $region26: #{tpu_custom_call.1} parent=19 // pred_check_branch
          %195 = sbr.rel (%p193) target = $region28
        $region27: #{tpu_custom_call.1} parent=19 // pred_region
          %s196 = smul.u32 4, %s23
          %p197 = scmp.lt.s32.totalorder %s20, 1
          %s198 = scalar_select %p197, %s20, 1
          %p199 = scmp.lt.s32.totalorder %s196, 3
          %s200 = scalar_select %p199, %s196, 3
          %p201 = scmp.lt.s32.totalorder %s22, 0
          %s202 = scalar_select %p201, %s22, 0
          %s203 = sadd.s32 %s202, %s200
          %s204 = smul.addr %s198, 4
          %s205 = sadd.s32 %s203, %s204
          %s206 = smul.addr %s205, 8
          %s207 = scalar_lea.vmem %s2, %s206
          %s208 = smul.u32 4, %s23
        $region28: #{tpu_custom_call.1} parent=19 // pred_fallthru
          _
      $region20: #{tpu_custom_call.1} parent=5 // pred_fallthru
        _
      %p209 = scmp.le.s32.totalorder 1, %s13
      %p210 = scmp.lt.s32.totalorder %s13, 3
      %p211 = pnand %p209, %p210
      %p212 = pneg %p211
      // Predicated region
      $region29: #{tpu_custom_call.1} parent=5 // pred_check
        _
      $region30: #{tpu_custom_call.1} parent=5 // pred_check_branch
        %214 = sbr.rel (%p211) target = $region32
      $region31: #{tpu_custom_call.1} parent=5 // pred_region
        %s215 = ssub.s32 %s13, 1
        // Predicated region
        $region33: #{tpu_custom_call.1} parent=31 // pred_check
          %p216 = pneg %p60
        $region34: #{tpu_custom_call.1} parent=31 // pred_check_branch
          %218 = sbr.rel (%p216) target = $region36
        $region35: #{tpu_custom_call.1} parent=31 // pred_region
          %219 = dma.done [#allocation5], 16
        $region36: #{tpu_custom_call.1} parent=31 // pred_fallthru
          _
        %220 = sfence
        %p221 = pneg %p60
        %p222 = pneg %p57
        %p223 = scmp.lt.s32.totalorder %s24, 1
        %s224 = scalar_select %p223, %s24, 1
        %p225 = scmp.lt.s32.totalorder %s25, 0
        %s226 = scalar_select %p225, %s25, 0
        %p227 = scmp.lt.s32.totalorder %s27, 0
        %s228 = scalar_select %p227, %s27, 0
        %s229 = sadd.s32 %s228, %s226
        %s230 = sadd.s32 %s229, %s224
        %s231 = smul.addr %s230, 8
        %s232 = scalar_lea.vmem %s1, %s231
        %p233 = pneg %p90
        %p234 = pneg %p87
        %s235 = smul.u32 4, %s27
        %p236 = scmp.lt.s32.totalorder %s24, 1
        %s237 = scalar_select %p236, %s24, 1
        %p238 = scmp.lt.s32.totalorder %s235, 3
        %s239 = scalar_select %p238, %s235, 3
        %p240 = scmp.lt.s32.totalorder %s26, 0
        %s241 = scalar_select %p240, %s26, 0
        %s242 = sadd.s32 %s241, %s239
        %s243 = smul.addr %s237, 4
        %s244 = sadd.s32 %s242, %s243
        %s245 = smul.addr %s244, 8
        %s246 = scalar_lea.vmem %s2, %s245
        %p247 = pneg %p120
        %p248 = pneg %p117
        %p249 = pneg %p150
        %p250 = pneg %p147
        %s251 = sand.u32 %s137, 1
        %s252 = scalar_lea.sflag [#allocation4], %s251
        %s253 = sand.u32 %s137, 1
        %s254 = smul.addr %s253, 8
        %s255 = scalar_lea.vmem [#allocation6], %s254
        %p256 = scmp.lt.s32.totalorder %s24, 1
        %s257 = scalar_select %p256, %s24, 1
        %p258 = scmp.lt.s32.totalorder %s25, 0
        %s259 = scalar_select %p258, %s25, 0
        %p260 = scmp.lt.s32.totalorder %s27, 0
        %s261 = scalar_select %p260, %s27, 0
        %s262 = sadd.s32 %s261, %s259
        %s263 = sadd.s32 %s262, %s257
        %s264 = smul.addr %s263, 8
        %s265 = scalar_lea.vmem %s1, %s264
        %s266 = smul.u32 4, %s27
        %p267 = scmp.lt.s32.totalorder %s24, 1
        %s268 = scalar_select %p267, %s24, 1
        %p269 = scmp.lt.s32.totalorder %s266, 3
        %s270 = scalar_select %p269, %s266, 3
        %p271 = scmp.lt.s32.totalorder %s26, 0
        %s272 = scalar_select %p271, %s26, 0
        %s273 = sadd.s32 %s272, %s270
        %s274 = smul.addr %s268, 4
        %s275 = sadd.s32 %s273, %s274
        %s276 = smul.addr %s275, 8
        %s277 = scalar_lea.vmem %s2, %s276
        %s278 = smul.u32 4, %s27
        %p279 = scmp.eq.s32.totalorder %s27, 0
        // Predicated region
        $region37: #{tpu_custom_call.1} parent=31 // pred_check
          %p280 = pneg %p279
        $region38: #{tpu_custom_call.1} parent=31 // pred_check_branch
          %282 = sbr.rel (%p280) target = $region40
        $region39: #{tpu_custom_call.1} parent=31 // pred_region
          %vm283 = vcmask 64512
          %284 = vst.msk [vmem:[#allocation2] sm:$0xff] %vm283, 0.0
        $region40: #{tpu_custom_call.1} parent=31 // pred_fallthru
          _
        %v285 = vld [vmem:[#allocation2] sm:$0xff]
        %v286 = vld [vmem:[%s265] sm:$0xff]
        %v287 = vld [vmem:[%s277] sm:$0xff]
        %v288 = vld [vmem:[%s277 + $0x8] sm:$0xff]
        %v289 = vld [vmem:[%s277 + $0x10] sm:$0xff]
        %v290 = vld [vmem:[%s277 + $0x18] sm:$0xff]
        %vm291 = vcmask 261120
        %v293 = vsel %vm291, %v286, 0
        %295 = vmatprep.subr.mxu0 0.0
        %296 = vmatpush1.msra.mxu0 %v287
        %297 = vmatprep.subr.mxu0 0.0
        %298 = vmatpush1.msra.mxu0 %v288
        %299 = vmatprep.subr.mxu0 0.0
        %300 = vmatpush1.msra.mxu0 %v289
        %301 = vmatprep.subr.mxu0 0.0
        %302 = vmatpush1.msra.mxu0 %v290
        %303 = vmatprep.subr.mxu0 0.0
        %304 = vmatpush1.msra.mxu0 0.0
        %305 = vmatprep.subr.mxu0 0.0
        %306 = vmatpush1.msra.mxu0 0.0
        %307 = vmatprep.subr.mxu0 0.0
        %308 = vmatpush1.msra.mxu0 0.0
        %309 = vmatprep.subr.mxu0 0.0
        %310 = vmatpush1.msra.mxu0 0.0
        %311 = vmatprep.subr.mxu0 0.0
        %312 = vmatpush1.msra.mxu0 0.0
        %313 = vmatprep.subr.mxu0 0.0
        %314 = vmatpush1.msra.mxu0 0.0
        %315 = vmatprep.subr.mxu0 0.0
        %316 = vmatpush1.msra.mxu0 0.0
        %317 = vmatprep.subr.mxu0 0.0
        %318 = vmatpush1.msra.mxu0 0.0
        %319 = vmatprep.subr.mxu0 0.0
        %320 = vmatpush1.msra.mxu0 0.0
        %321 = vmatprep.subr.mxu0 0.0
        %322 = vmatpush1.msra.mxu0 0.0
        %323 = vmatprep.subr.mxu0 0.0
        %324 = vmatpush1.msra.mxu0 0.0
        %325 = vmatprep.subr.mxu0 0.0
        %326 = vmatpush1.msra.mxu0 0.0
        %327 = vmatprep.subr.mxu0 0.0
        %328 = vmatpush1.msra.mxu0 0.0
        %329 = vmatprep.subr.mxu0 0.0
        %330 = vmatpush1.msra.mxu0 0.0
        %331 = vmatprep.subr.mxu0 0.0
        %332 = vmatpush1.msra.mxu0 0.0
        %333 = vmatprep.subr.mxu0 0.0
        %334 = vmatpush1.msra.mxu0 0.0
        %335 = vmatprep.subr.mxu0 0.0
        %336 = vmatpush1.msra.mxu0 0.0
        %337 = vmatprep.subr.mxu0 0.0
        %338 = vmatpush1.msra.mxu0 0.0
        %339 = vmatprep.subr.mxu0 0.0
        %340 = vmatpush1.msra.mxu0 0.0
        %341 = vmatprep.subr.mxu0 0.0
        %342 = vmatpush1.msra.mxu0 0.0
        %343 = vmatprep.subr.mxu0 0.0
        %344 = vmatpush1.msra.mxu0 0.0
        %345 = vmatprep.subr.mxu0 0.0
        %346 = vmatpush1.msra.mxu0 0.0
        %347 = vmatprep.subr.mxu0 0.0
        %348 = vmatpush1.msra.mxu0 0.0
        %349 = vmatprep.subr.mxu0 0.0
        %350 = vmatpush1.msra.mxu0 0.0
        %351 = vmatprep.subr.mxu0 0.0
        %352 = vmatpush1.msra.mxu0 0.0
        %353 = vmatprep.subr.mxu0 0.0
        %354 = vmatpush1.msra.mxu0 0.0
        %355 = vmatprep.subr.mxu0 0.0
        %356 = vmatpush1.msra.mxu0 0.0
        %357 = vmatprep.subr.mxu0 0.0
        %358 = vmatpush1.msra.mxu0 0.0
        %359 = vmatprep.mubr.f32.mxu0 0.0
        %360 = vmatmul.mubr.f32.gmra.mrb[0].mxu0 %v293
        %v361 = vpop.f32.mrb[0].mxu0
        %v362 = vadd.f32 0.0, %v361
        %v363 = vpop.f32.mrb[0].mxu0
        %364 = vdwg.mxu0
        %v365 = vadd.f32 %v285, %v362
        %vm366 = vcmask 64512
        %367 = vst.msk [vmem:[#allocation2] sm:$0xff] %vm366, %v365
        // Predicated region
        $region41: #{tpu_custom_call.1} parent=31 // pred_check
          %p368 = pneg %p279
        $region42: #{tpu_custom_call.1} parent=31 // pred_check_branch
          %370 = sbr.rel (%p368) target = $region44
        $region43: #{tpu_custom_call.1} parent=31 // pred_region
          %s371 = sld [smem:[#allocation3]]
          %s372 = sld [smem:[#allocation3 + $0x1]]
          %v373 = vld [vmem:[#allocation2] sm:$0xff]
          %v374 = vstv %s371
          %v375 = vmul.f32 %v373, %v374
          %v376 = vstv %s372
          %v377 = vadd.f32 %v375, %v376
          %v378 = vmul.f32 %v377, %v377
          %v379 = vmul.f32 %v377, %v378
          %380 = vst.msk [vmem:[%s255] sm:$0xff] %vm366, %v379
        $region44: #{tpu_custom_call.1} parent=31 // pred_fallthru
          _
        %s381 = sand.u32 %s137, 1
        %s382 = scalar_lea.sflag [#allocation4], %s381
        %s383 = sand.u32 %s137, 1
        %s384 = smul.addr %s383, 8
        %s385 = scalar_lea.vmem [#allocation6], %s384
        // Predicated region
        $region45: #{tpu_custom_call.1} parent=31 // pred_check
          %p386 = pneg %p147
        $region46: #{tpu_custom_call.1} parent=31 // pred_check_branch
          %388 = sbr.rel (%p386) target = $region48
        $region47: #{tpu_custom_call.1} parent=31 // pred_region
          %s390 = ssub.s32 128, 128
          %391 = vsyncadd %s382, %s390
          %s392 = sadd.s32 %s26, %s25
          %s393 = sadd.s32 %s392, %s24
          %s394 = smul.addr %s393, 128
          %s395 = scalar_lea.hbm %s3, %s394
          %s397 = sshll.u32 %s385, 4
          %s398 = int_to_ptr.vmem [resolvable:$true] %s397
          %400 = dma.vmem_to_hbm [thread:$0]  %s398, 128, %s395, %s382
        $region48: #{tpu_custom_call.1} parent=31 // pred_fallthru
          _
      $region32: #{tpu_custom_call.1} parent=5 // pred_fallthru
        _
      %p401 = scmp.le.s32.totalorder 2, %s13
      // Predicated region
      $region49: #{tpu_custom_call.1} parent=5 // pred_check
        %p402 = pneg %p401
      $region50: #{tpu_custom_call.1} parent=5 // pred_check_branch
        %404 = sbr.rel (%p402) target = $region52
      $region51: #{tpu_custom_call.1} parent=5 // pred_region
        %s405 = ssub.s32 %s13, 2
        // Predicated region
        $region53: #{tpu_custom_call.1} parent=51 // pred_check
          %p406 = pneg %p153
        $region54: #{tpu_custom_call.1} parent=51 // pred_check_branch
          %408 = sbr.rel (%p406) target = $region56
        $region55: #{tpu_custom_call.1} parent=51 // pred_region
          %s409 = sand.u32 %s138, 1
          %s410 = scalar_lea.sflag [#allocation4], %s409
          %s411 = sand.u32 %s138, 1
          %s412 = smul.addr %s411, 8
          %s413 = scalar_lea.vmem [#allocation6], %s412
          %414 = dma.done %s410, 128
        $region56: #{tpu_custom_call.1} parent=51 // pred_fallthru
          _
      $region52: #{tpu_custom_call.1} parent=5 // pred_fallthru
        _
    $region6: #{tpu_custom_call.1} parent=1 // loop_footer
      %s17 = sadd.s32 1, %s13
    $region7: #{tpu_custom_call.1} parent=1 // loop_footer_branch
      %12 = sbr.rel target = $region3
    $region8: #{tpu_custom_call.1} parent=1 // loop_exit
      _
    %415 = vsyncpa [#allocation4], 1
    %s416 = scalar_lea.sflag [#allocation4], 1
    %417 = vsyncpa %s416, 1
    %418 = vsyncpa [#allocation5], 1
    %s419 = scalar_lea.sflag [#allocation5], 1
    %420 = vsyncpa %s419, 1

</llo_original>
